<compile_context>
chip_gen: v6e
topology: v6e:2x2x1
jax: 0.10.0
libtpu: 0.0.40
codegen_flags: <defaults>
</compile_context>

<pallas_src>
import jax
import jax.numpy as jnp
from jax.experimental import pallas as pl
from jax.experimental.pallas import tpu as pltpu

EPS = 1e-5


def _encoder_block_kernel(p_ref, w_ref, gb_ref, o_ref):
    # p_ref : (K, P)    bf16  -- transposed im2col patches for one image
    # w_ref : (Cout, K) bf16
    # gb_ref: (Cout, 2) f32   -- [:, 0] = gamma, [:, 1] = beta
    # o_ref : (Cout, P) f32
    y = jnp.dot(w_ref[...], p_ref[...],
                preferred_element_type=jnp.float32)          # (Cout, P) on MXU, f32 acc

    # Fused InstanceNorm2d epilogue (biased variance, one elementwise pass over y).
    inv_p = 1.0 / y.shape[1]
    s1 = jnp.sum(y, axis=1, keepdims=True)                   # (Cout, 1)
    s2 = jnp.sum(y * y, axis=1, keepdims=True)               # (Cout, 1)
    mean = s1 * inv_p
    var = s2 * inv_p - mean * mean
    inv_std = jax.lax.rsqrt(var + EPS)                       # EUP slot
    gamma = gb_ref[:, 0:1]
    beta = gb_ref[:, 1:2]
    scale = gamma * inv_std                                  # (Cout, 1)
    shift = beta - mean * scale                              # (Cout, 1)
    o_ref[...] = jnp.maximum(y * scale + shift, 0.0).astype(o_ref.dtype)


def _im2col_T(x, kh, kw, stride, pad):
    """NCHW input -> per-image transposed patch matrix (B, Cin*kh*kw, Ho*Wo).
    Feature index ordering c*kh*kw + i*kw + j matches weight.reshape(Cout, -1)."""
    B, C, H, W = x.shape
    xp = jnp.pad(x, ((0, 0), (0, 0), (pad, pad), (pad, pad)))
    Ho = (H + 2 * pad - kh) // stride + 1
    Wo = (W + 2 * pad - kw) // stride + 1
    taps = []
    for i in range(kh):
        for j in range(kw):
            taps.append(xp[:, :, i:i + stride * Ho:stride, j:j + stride * Wo:stride])
    p = jnp.stack(taps, axis=2)              # (B, C, kh*kw, Ho, Wo)
    p = p.reshape(B, C * kh * kw, Ho * Wo)   # (B, K, P), K index = c*kh*kw + i*kw + j
    return p, Ho, Wo


def encoder_block(x_nchw, weight, gamma, beta, *, kernel_size=4, stride=2, pad=1):
    """x_nchw: (B, Cin, H, W); weight: (Cout, Cin, kh, kw); gamma/beta: (Cout,).
    Returns (B, Cout, Ho, Wo) float32."""
    B, Cin, H, W = x_nchw.shape
    Cout = weight.shape[0]
    kh = kw = kernel_size

    patches_t, Ho, Wo = _im2col_T(x_nchw, kh, kw, stride, pad)   # (B, K, P)
    P = Ho * Wo
    K = Cin * kh * kw

    # bf16 MXU inputs, emitted directly in the layout the kernel consumes.
    patches_t = patches_t.astype(jnp.bfloat16)
    w_t = weight.reshape(Cout, K).astype(jnp.bfloat16)           # (Cout, K)
    gb = jnp.stack([gamma, beta], axis=1).astype(jnp.float32)    # (Cout, 2)

    cost = pl.CostEstimate(
        flops=2 * B * Cout * K * P,
        transcendentals=B * Cout,
        bytes_accessed=(B * K * P) * 2 + (Cout * K) * 2 + (Cout * 2) * 4
                       + (B * Cout * P) * 4,
    )

    out = pl.pallas_call(
        _encoder_block_kernel,
        out_shape=jax.ShapeDtypeStruct((B, Cout, P), jnp.float32),
        grid_spec=pltpu.PrefetchScalarGridSpec(
            num_scalar_prefetch=0,
            grid=(B,),
            in_specs=[
                # leading batch dim squeezed out of the kernel refs
                pl.BlockSpec((None, K, P), lambda b: (b, 0, 0)),
                pl.BlockSpec((Cout, K), lambda b: (0, 0)),
                pl.BlockSpec((Cout, 2), lambda b: (0, 0)),
            ],
            out_specs=pl.BlockSpec((None, Cout, P), lambda b: (b, 0, 0)),
        ),
        compiler_params=pltpu.CompilerParams(
            dimension_semantics=("parallel",),
            vmem_limit_bytes=32 * 1024 * 1024,
        ),
        cost_estimate=cost,
    )(patches_t, w_t, gb)

    # (B, Cout, Ho*Wo) is already channel-major: a single reshape gives NCHW.
    return out.reshape(B, Cout, Ho, Wo)


def _reference(x_nchw, weight, gamma, beta, *, stride=2, pad=1):
    """Plain-JAX f32 reference for verification."""
    y = jax.lax.conv_general_dilated(
        x_nchw, weight, window_strides=(stride, stride),
        padding=((pad, pad), (pad, pad)),
        dimension_numbers=("NCHW", "OIHW", "NCHW"))
    mean = jnp.mean(y, axis=(2, 3), keepdims=True)
    var = jnp.mean((y - mean) ** 2, axis=(2, 3), keepdims=True)
    y = (y - mean) * jax.lax.rsqrt(var + EPS)
    y = y * gamma.reshape(1, -1, 1, 1) + beta.reshape(1, -1, 1, 1)
    return jnp.maximum(y, 0.0)


if __name__ == "__main__":
    # Small shapes consistent with the module: B=2, Cin=4, H=W=16 -> Ho=Wo=8, Cout=8
    B, Cin, H, W = 2, 4, 16, 16
    Cout, KSZ = 8, 4

    key = jax.random.PRNGKey(0)
    kx, kw_, kg, kb = jax.random.split(key, 4)
    x = jax.random.normal(kx, (B, Cin, H, W), dtype=jnp.float32)
    weight = jax.random.normal(kw_, (Cout, Cin, KSZ, KSZ), dtype=jnp.float32) * 0.1
    # InstanceNorm2d(affine=True) params (deterministic synthetic init)
    gamma = 1.0 + 0.1 * jax.random.normal(kg, (Cout,), dtype=jnp.float32)
    beta = 0.1 * jax.random.normal(kb, (Cout,), dtype=jnp.float32)

    out = encoder_block(x, weight, gamma, beta, kernel_size=KSZ, stride=2, pad=1)
    out = jax.block_until_ready(out)

    ref = _reference(x, weight, gamma, beta, stride=2, pad=1)
    assert out.shape == (B, Cout, H // 2, W // 2), out.shape
    # bf16 MXU inputs -> slightly looser tolerance than the pure-f32 reference.
    max_err = float(jnp.max(jnp.abs(out - ref)))
    assert jnp.allclose(out, ref, atol=5e-2, rtol=5e-2), max_err

    print("KERNEL_OK")
</pallas_src>

<mosaic_0001>
module attributes {stable_mosaic.version = 11 : i64} {
  func.func @_encoder_block_kernel(%arg0: i32, %arg1: memref<1x64x64xbf16, #tpu.memory_space<vmem>>, %arg2: memref<8x64xbf16, #tpu.memory_space<vmem>>, %arg3: memref<8x2xf32, #tpu.memory_space<vmem>>, %arg4: memref<1x8x64xf32, #tpu.memory_space<vmem>>) attributes {dimension_semantics = [#tpu.dimension_semantics<parallel>], iteration_bounds = array<i64: 2>, scalar_prefetch = 0 : i64, scratch_operands = 0 : i64, tpu.core_type = #tpu.core_type<tc>, window_params = [{transform_indices = @transform_0, window_bounds = array<i64: 1, 64, 64>}, {pipeline_mode = #tpu.pipeline_mode<synchronous>, transform_indices = @transform_1, window_bounds = array<i64: 8, 64>}, {pipeline_mode = #tpu.pipeline_mode<synchronous>, transform_indices = @transform_2, window_bounds = array<i64: 8, 2>}, {transform_indices = @transform_3, window_bounds = array<i64: 1, 8, 64>}]} {
    %c0 = arith.constant 0 : index
    %c0_0 = arith.constant 0 : index
    %0 = vector.load %arg2[%c0, %c0_0] : memref<8x64xbf16, #tpu.memory_space<vmem>>, vector<8x64xbf16>
    %c0_1 = arith.constant 0 : index
    %c0_2 = arith.constant 0 : index
    %c0_3 = arith.constant 0 : index
    %1 = vector.load %arg1[%c0_1, %c0_2, %c0_3] : memref<1x64x64xbf16, #tpu.memory_space<vmem>>, vector<1x64x64xbf16>
    %2 = vector.shape_cast %1 : vector<1x64x64xbf16> to vector<64x64xbf16>
    %cst = arith.constant dense<0.000000e+00> : vector<8x64xf32>
    %3 = tpu.matmul %0, %2, %cst {dimension_numbers = #tpu.dot_dimension_numbers<[1], [0], [0], [1], [0, 0, 1, 1], [], []>} : vector<8x64xbf16>, vector<64x64xbf16>, vector<8x64xf32> -> vector<8x64xf32>
    %cst_4 = arith.constant dense<0.000000e+00> : vector<8xf32>
    %4 = vector.multi_reduction <add>, %3, %cst_4 [1] : vector<8x64xf32> to vector<8xf32>
    %5 = vector.shape_cast %4 : vector<8xf32> to vector<8x1xf32>
    %6 = arith.mulf %3, %3 : vector<8x64xf32>
    %cst_5 = arith.constant dense<0.000000e+00> : vector<8xf32>
    %7 = vector.multi_reduction <add>, %6, %cst_5 [1] : vector<8x64xf32> to vector<8xf32>
    %8 = vector.shape_cast %7 : vector<8xf32> to vector<8x1xf32>
    %cst_6 = arith.constant 1.562500e-02 : f32
    %9 = vector.broadcast %cst_6 : f32 to vector<8x1xf32>
    %10 = arith.mulf %5, %9 : vector<8x1xf32>
    %cst_7 = arith.constant 1.562500e-02 : f32
    %11 = vector.broadcast %cst_7 : f32 to vector<8x1xf32>
    %12 = arith.mulf %8, %11 : vector<8x1xf32>
    %13 = arith.mulf %10, %10 : vector<8x1xf32>
    %14 = arith.subf %12, %13 : vector<8x1xf32>
    %cst_8 = arith.constant 9.99999974E-6 : f32
    %15 = vector.broadcast %cst_8 : f32 to vector<8x1xf32>
    %16 = arith.addf %14, %15 : vector<8x1xf32>
    %17 = math.rsqrt %16 : vector<8x1xf32>
    %c0_9 = arith.constant 0 : index
    %c0_10 = arith.constant 0 : index
    %18 = vector.load %arg3[%c0_9, %c0_10] : memref<8x2xf32, #tpu.memory_space<vmem>>, vector<8x1xf32>
    %c0_11 = arith.constant 0 : index
    %c1 = arith.constant 1 : index
    %19 = vector.load %arg3[%c0_11, %c1] : memref<8x2xf32, #tpu.memory_space<vmem>>, vector<8x1xf32>
    %20 = arith.mulf %18, %17 : vector<8x1xf32>
    %21 = arith.mulf %10, %20 : vector<8x1xf32>
    %22 = arith.subf %19, %21 : vector<8x1xf32>
    %23 = vector.broadcast %20 : vector<8x1xf32> to vector<8x64xf32>
    %24 = arith.mulf %3, %23 : vector<8x64xf32>
    %25 = vector.broadcast %22 : vector<8x1xf32> to vector<8x64xf32>
    %26 = arith.addf %24, %25 : vector<8x64xf32>
    %cst_12 = arith.constant 0.000000e+00 : f32
    %27 = vector.broadcast %cst_12 : f32 to vector<8x64xf32>
    %28 = arith.maximumf %26, %27 : vector<8x64xf32>
    %c0_13 = arith.constant 0 : index
    %c0_14 = arith.constant 0 : index
    %c0_15 = arith.constant 0 : index
    %29 = vector.load %arg4[%c0_13, %c0_14, %c0_15] : memref<1x8x64xf32, #tpu.memory_space<vmem>>, vector<1x8x64xf32>
    %30 = vector.shape_cast %29 : vector<1x8x64xf32> to vector<8x64xf32>
    %31 = vector.shape_cast %28 : vector<8x64xf32> to vector<1x8x64xf32>
    tpu.vector_store %arg4[%c0_13, %c0_14, %c0_15], %31 {strides = array<i32>} : memref<1x8x64xf32, #tpu.memory_space<vmem>>, vector<1x8x64xf32>,
    return
  }
  func.func @transform_0(%arg0: i32) -> (i32, i32, i32) {
    %c0_i32 = arith.constant 0 : i32
    %c0_i32_0 = arith.constant 0 : i32
    %c0_i32_1 = arith.constant 0 : i32
    return %arg0, %c0_i32, %c0_i32_0 : i32, i32, i32
  }
  func.func @transform_1(%arg0: i32) -> (i32, i32) {
    %c0_i32 = arith.constant 0 : i32
    %c0_i32_0 = arith.constant 0 : i32
    %c0_i32_1 = arith.constant 0 : i32
    return %c0_i32, %c0_i32_0 : i32, i32
  }
  func.func @transform_2(%arg0: i32) -> (i32, i32) {
    %c0_i32 = arith.constant 0 : i32
    %c0_i32_0 = arith.constant 0 : i32
    %c0_i32_1 = arith.constant 0 : i32
    return %c0_i32, %c0_i32_0 : i32, i32
  }
  func.func @transform_3(%arg0: i32) -> (i32, i32, i32) {
    %c0_i32 = arith.constant 0 : i32
    %c0_i32_0 = arith.constant 0 : i32
    %c0_i32_1 = arith.constant 0 : i32
    return %arg0, %c0_i32, %c0_i32_0 : i32, i32, i32
  }
}

</mosaic_0001>

<llo_original>
// kernel: tpu_custom_call.1
$region0: #{tpu_custom_call.1}
  #allocation0 [shape = 'u32[]', space=smem, size = 0x4, offset = 0x4, fixed_abs, tag = 'smem constant byte address 0x4 - core index']
  #allocation1 [shape = 'u32[144,128]{1,0:T(1,128)}', space=vmem, size = 0x12000, scoped, tag = 'internal scratch']
  %s0 = inlined_call_operand.hbm [shape: bf16[2,64,64], index: 0, kind: input, shape index: {}]
  %s1 = inlined_call_operand.vmem [shape: bf16[8,64], index: 1, kind: input, shape index: {}]
  %s2 = inlined_call_operand.vmem [shape: f32[8,2], index: 2, kind: input, shape index: {}]
  %s3 = inlined_call_operand.hbm [shape: f32[2,8,64], index: 3, kind: output, shape index: {}]
  %s4 = sld [smem:[#allocation0]]
  $region49: #{tpu_custom_call.1} parent=0
    _
  %s6 = ssub.s32 1, %s4
  %s7 = scalar_select 0, %s6, %s4
  $region1: #{tpu_custom_call.1} parent=0
    #allocation2 [shape = 'u8[32768]{0}', space=vmem, size = 0x8000, scoped, tag = 'input window, operand 0']
    #allocation3 [shape = 's32[2]{0}', space=sflag, size = 0x8, scoped, tag = 'scoped memory for tpu_custom_call.1']
    #allocation4 [shape = 's32[2]{0}', space=sflag, size = 0x8, scoped, tag = 'scoped memory for tpu_custom_call.1']
    #allocation5 [shape = 'u8[8192]{0}', space=vmem, size = 0x2000, scoped, tag = 'output window, operand 0']
    %8 = vsyncpa [#allocation3], 0
    %s9 = scalar_lea.sflag [#allocation3], 1
    %10 = vsyncpa %s9, 0
    %11 = vsyncpa [#allocation4], 0
    %s12 = scalar_lea.sflag [#allocation4], 1
    %13 = vsyncpa %s12, 0
    loop: start=0, step=1, limit=4
    $region2: #{tpu_custom_call.1} parent=1 // loop_pre_header
      _
    $region3: #{tpu_custom_call.1} parent=1 // loop_header
      %s15 = sphi 0, %s19
      %p16 = scmp.ge.s32.totalorder %s15, 4
      %s25 = sphi 0, %s27
      %s28 = sphi 0, %s25
      %s29 = sphi 0, %s28
      %s45 = sphi 0, %s29
      %s49 = sphi 0, %s49
      %s51 = sphi 0, %s49
      %s52 = sphi 0, %s51
      %s66 = sphi 0, %s52
      %s70 = sphi 0, %s70
      %s72 = sphi 0, %s70
      %s73 = sphi 0, %s72
      %s87 = sphi 0, %s73
      %s93 = sphi 0, %s95
      %s96 = sphi 0, %s93
      %s97 = sphi 0, %s96
      %s113 = sphi 0, %s97
    $region4: #{tpu_custom_call.1} parent=1 // loop_header_branch
      %18 = sbr.rel (%p16) target = $region8
    $region5: #{tpu_custom_call.1} parent=1 // loop_body
      %s20 = ssub.s32 %s15, 1
      %s21 = ssub.s32 %s15, 2
      %s22 = sadd.s32 %s15, 1
      %s23 = ssub.s32 %s15, %s22
      %p24 = scmp.eq.s32.totalorder %s23, 0
      %s26 = sadd.s32 %s25, 1
      %s27 = scalar_select %p24, %s25, %s26
      %p30 = pneg %p24
      %p31 = scmp.eq.s32.totalorder %s15, 1
      %p32 = por %p30, %p31
      %p33 = scmp.ne.s32.totalorder %s25, %s28
      %p34 = scmp.eq.s32.totalorder %s15, 0
      %p35 = por %p33, %p34
      %p36 = scmp.ne.s32.totalorder %s25, %s28
      %p37 = scmp.eq.s32.totalorder %s20, 1
      %p38 = por %p36, %p37
      %p39 = scmp.ne.s32.totalorder %s28, %s29
      %p40 = scmp.eq.s32.totalorder %s20, 0
      %p41 = por %p39, %p40
      %p42 = scmp.ne.s32.totalorder %s28, %s29
      %p43 = scmp.eq.s32.totalorder %s21, 1
      %p44 = por %p42, %p43
      %p46 = scmp.ne.s32.totalorder %s29, %s45
      %p47 = scmp.eq.s32.totalorder %s21, 0
      %p48 = por %p46, %p47
      %s50 = sadd.s32 %s49, 1
      %p53 = scmp.eq.s32.totalorder %s15, 1
      %p54 = scmp.ne.s32.totalorder %s49, %s51
      %p55 = scmp.eq.s32.totalorder %s15, 0
      %p56 = por %p54, %p55
      %p57 = scmp.ne.s32.totalorder %s49, %s51
      %p58 = scmp.eq.s32.totalorder %s20, 1
      %p59 = por %p57, %p58
      %p60 = scmp.ne.s32.totalorder %s51, %s52
      %p61 = scmp.eq.s32.totalorder %s20, 0
      %p62 = por %p60, %p61
      %p63 = scmp.ne.s32.totalorder %s51, %s52
      %p64 = scmp.eq.s32.totalorder %s21, 1
      %p65 = por %p63, %p64
      %p67 = scmp.ne.s32.totalorder %s52, %s66
      %p68 = scmp.eq.s32.totalorder %s21, 0
      %p69 = por %p67, %p68
      %s71 = sadd.s32 %s70, 1
      %p74 = scmp.eq.s32.totalorder %s15, 1
      %p75 = scmp.ne.s32.totalorder %s70, %s72
      %p76 = scmp.eq.s32.totalorder %s15, 0
      %p77 = por %p75, %p76
      %p78 = scmp.ne.s32.totalorder %s70, %s72
      %p79 = scmp.eq.s32.totalorder %s20, 1
      %p80 = por %p78, %p79
      %p81 = scmp.ne.s32.totalorder %s72, %s73
      %p82 = scmp.eq.s32.totalorder %s20, 0
      %p83 = por %p81, %p82
      %p84 = scmp.ne.s32.totalorder %s72, %s73
      %p85 = scmp.eq.s32.totalorder %s21, 1
      %p86 = por %p84, %p85
      %p88 = scmp.ne.s32.totalorder %s73, %s87
      %p89 = scmp.eq.s32.totalorder %s21, 0
      %p90 = por %p88, %p89
      %s91 = ssub.s32 %s15, %s22
      %p92 = scmp.eq.s32.totalorder %s91, 0
      %s94 = sadd.s32 %s93, 1
      %s95 = scalar_select %p92, %s93, %s94
      %p98 = pneg %p92
      %p99 = scmp.eq.s32.totalorder %s15, 1
      %p100 = por %p98, %p99
      %p101 = scmp.ne.s32.totalorder %s93, %s96
      %p102 = scmp.eq.s32.totalorder %s15, 0
      %p103 = por %p101, %p102
      %p104 = scmp.ne.s32.totalorder %s93, %s96
      %p105 = scmp.eq.s32.totalorder %s20, 1
      %p106 = por %p104, %p105
      %p107 = scmp.ne.s32.totalorder %s96, %s97
      %p108 = scmp.eq.s32.totalorder %s20, 0
      %p109 = por %p107, %p108
      %p110 = scmp.ne.s32.totalorder %s96, %s97
      %p111 = scmp.eq.s32.totalorder %s21, 1
      %p112 = por %p110, %p111
      %p114 = scmp.ne.s32.totalorder %s97, %s113
      %p115 = scmp.eq.s32.totalorder %s21, 0
      %p116 = por %p114, %p115
      %p117 = scmp.le.s32.totalorder 1, %s15
      %p118 = scmp.lt.s32.totalorder %s15, 3
      %p119 = pnand %p117, %p118
      %p120 = pneg %p119
      // Predicated region
      $region9: #{tpu_custom_call.1} parent=5 // pred_check
        _
      $region10: #{tpu_custom_call.1} parent=5 // pred_check_branch
        %122 = sbr.rel (%p119) target = $region12
      $region11: #{tpu_custom_call.1} parent=5 // pred_region
        %s123 = ssub.s32 %s15, 1
        // Predicated region
        $region13: #{tpu_custom_call.1} parent=11 // pred_check
          %p124 = pneg %p62
        $region14: #{tpu_custom_call.1} parent=11 // pred_check_branch
          %126 = sbr.rel (%p124) target = $region16
        $region15: #{tpu_custom_call.1} parent=11 // pred_region
          _
        $region16: #{tpu_custom_call.1} parent=11 // pred_fallthru
          _
        // Predicated region
        $region17: #{tpu_custom_call.1} parent=11 // pred_check
          %p127 = pneg %p83
        $region18: #{tpu_custom_call.1} parent=11 // pred_check_branch
          %129 = sbr.rel (%p127) target = $region20
        $region19: #{tpu_custom_call.1} parent=11 // pred_region
          _
        $region20: #{tpu_custom_call.1} parent=11 // pred_fallthru
          _
      $region12: #{tpu_custom_call.1} parent=5 // pred_fallthru
        _
      %p130 = scmp.lt.s32.totalorder %s15, 2
      // Predicated region
      $region21: #{tpu_custom_call.1} parent=5 // pred_check
        %p131 = pneg %p130
      $region22: #{tpu_custom_call.1} parent=5 // pred_check_branch
        %133 = sbr.rel (%p131) target = $region24
      $region23: #{tpu_custom_call.1} parent=5 // pred_region
        // Predicated region
        $region25: #{tpu_custom_call.1} parent=23 // pred_check
          %p134 = pneg %p35
        $region26: #{tpu_custom_call.1} parent=23 // pred_check_branch
          %136 = sbr.rel (%p134) target = $region28
        $region27: #{tpu_custom_call.1} parent=23 // pred_region
          %s137 = sand.u32 %s25, 1
          %s138 = scalar_lea.sflag [#allocation3], %s137
          %s139 = sand.u32 %s25, 1
          %s140 = smul.addr %s139, 32
          %s141 = scalar_lea.vmem [#allocation2], %s140
          %s143 = ssub.s32 512, 512
          %144 = vsyncadd %s138, %s143
          %s145 = smul.addr %s15, 8
          %s146 = smul.addr %s145, 64
          %s147 = scalar_lea.hbm %s0, %s146
          %s148 = sshll.u32 %s141, 4
          %s149 = int_to_ptr.vmem [resolvable:$true] %s148
          %154 = dma.hbm_to_vmem [thread:$0]  %s147, 512, %s149, %s138, 64, 64, 4
        $region28: #{tpu_custom_call.1} parent=23 // pred_fallthru
          _
      $region24: #{tpu_custom_call.1} parent=5 // pred_fallthru
        _
      %p155 = scmp.le.s32.totalorder 1, %s15
      %p156 = scmp.lt.s32.totalorder %s15, 3
      %p157 = pnand %p155, %p156
      %p158 = pneg %p157
      // Predicated region
      $region29: #{tpu_custom_call.1} parent=5 // pred_check
        _
      $region30: #{tpu_custom_call.1} parent=5 // pred_check_branch
        %160 = sbr.rel (%p157) target = $region32
      $region31: #{tpu_custom_call.1} parent=5 // pred_region
        %s161 = ssub.s32 %s15, 1
        %s162 = sand.u32 %s28, 1
        %s163 = scalar_lea.sflag [#allocation3], %s162
        %s164 = sand.u32 %s28, 1
        %s165 = smul.addr %s164, 32
        %s166 = scalar_lea.vmem [#allocation2], %s165
        // Predicated region
        $region33: #{tpu_custom_call.1} parent=31 // pred_check
          %p167 = pneg %p41
        $region34: #{tpu_custom_call.1} parent=31 // pred_check_branch
          %169 = sbr.rel (%p167) target = $region36
        $region35: #{tpu_custom_call.1} parent=31 // pred_region
          %170 = dma.done %s163, 512
        $region36: #{tpu_custom_call.1} parent=31 // pred_fallthru
          _
        %s171 = sand.u32 %s28, 1
        %s172 = scalar_lea.sflag [#allocation3], %s171
        %s173 = sand.u32 %s28, 1
        %s174 = smul.addr %s173, 32
        %s175 = scalar_lea.vmem [#allocation2], %s174
        %p176 = pneg %p41
        %p177 = pneg %p38
        %p178 = pneg %p62
        %p179 = pneg %p59
        %p180 = pneg %p83
        %p181 = pneg %p80
        %p182 = pneg %p109
        %p183 = pneg %p106
        %s184 = sand.u32 %s96, 1
        %s185 = scalar_lea.sflag [#allocation4], %s184
        %s186 = sand.u32 %s96, 1
        %s187 = smul.addr %s186, 8
        %s188 = scalar_lea.vmem [#allocation5], %s187
        %v190 = vld [vmem:[%s1] sm:$0xf]
        %v191 = vld [vmem:[%s166] sm:$0xf]
        %v192 = vld [vmem:[%s166 + $0x4] sm:$0xf]
        %v193 = vld [vmem:[%s166 + $0x8] sm:$0xf]
        %v194 = vld [vmem:[%s166 + $0xc] sm:$0xf]
        %v195 = vld [vmem:[%s166 + $0x10] sm:$0xf]
        %v196 = vld [vmem:[%s166 + $0x14] sm:$0xf]
        %v197 = vld [vmem:[%s166 + $0x18] sm:$0xf]
        %v198 = vld [vmem:[%s166 + $0x1c] sm:$0xf]
        %v207 = vunpack.c.l.b16 %v191
        %v208 = vunpack.c.l.b16 %v192
        %v209 = vunpack.c.l.b16 %v193
        %v210 = vunpack.c.l.b16 %v194
        %v211 = vunpack.c.l.b16 %v195
        %v212 = vunpack.c.l.b16 %v196
        %v213 = vunpack.c.l.b16 %v197
        %v214 = vunpack.c.l.b16 %v198
        %v215 = vpack.c.b16 %v208, %v207
        %v216 = vpack.c.b16 %v210, %v209
        %v217 = vpack.c.b16 %v212, %v211
        %v218 = vpack.c.b16 %v214, %v213
        %vm223 = vcmask 523264
        %v225 = vsel %vm223, %v190, 0
        %227 = vmatprep.subr.bf16.mxu0 0
        %228 = vmatpush1.bf16.msra.mxu0 0
        %229 = vmatprep.subr.bf16.mxu0 0
        %230 = vmatpush1.bf16.msra.mxu0 0
        %231 = vmatprep.subr.bf16.mxu0 0
        %232 = vmatpush1.bf16.msra.mxu0 0
        %233 = vmatprep.subr.bf16.mxu0 0
        %234 = vmatpush1.bf16.msra.mxu0 0
        %235 = vmatprep.subr.bf16.mxu0 0
        %236 = vmatpush1.bf16.msra.mxu0 %v218
        %237 = vmatprep.subr.bf16.mxu0 0
        %238 = vmatpush1.bf16.msra.mxu0 %v217
        %239 = vmatprep.subr.bf16.mxu0 0
        %240 = vmatpush1.bf16.msra.mxu0 %v216
        %241 = vmatprep.subr.bf16.mxu0 0
        %242 = vmatpush1.bf16.msra.mxu0 %v215
        %243 = vmatprep.subr.bf16.mxu0 0
        %244 = vmatpush2.bf16.msra.mxu0 0
        %245 = vmatprep.subr.bf16.mxu0 0
        %246 = vmatpush2.bf16.msra.mxu0 0
        %247 = vmatprep.subr.bf16.mxu0 0
        %248 = vmatpush2.bf16.msra.mxu0 0
        %249 = vmatprep.subr.bf16.mxu0 0
        %250 = vmatpush2.bf16.msra.mxu0 0
        %251 = vmatprep.subr.bf16.mxu0 0
        %252 = vmatpush2.bf16.msra.mxu0 0
        %253 = vmatprep.subr.bf16.mxu0 0
        %254 = vmatpush2.bf16.msra.mxu0 0
        %255 = vmatprep.subr.bf16.mxu0 0
        %256 = vmatpush2.bf16.msra.mxu0 0
        %257 = vmatprep.subr.bf16.mxu0 0
        %258 = vmatpush2.bf16.msra.mxu0 0
        %259 = vmatprep.mubr.bf16.mxu0 0
        %260 = vmatmul.mubr.bf16.gmra.mxu0 %v225
        %v261 = vpop.f32.mrf.mxu0
        %v262 = vadd.f32 0.0, %v261
        %v263 = vpop.f32.mrf.mxu0
        %v264 = vpop.f32.mrf.mxu0
        %v265 = vpop.f32.mrf.mxu0
        %266 = vdwg.mxu0
        %v267 = vsel %vm223, %v262, 0.0
        %268 = vadd.xlane.f32.xlu0 %v267
        %v269 = vpop.xlane.xlu0 %268
        %v270 = vmul.f32 %v262, %v262
        %v271 = vsel %vm223, %v270, 0.0
        %272 = vadd.xlane.f32.xlu0 %v271
        %v273 = vpop.xlane.xlu0 %272
        %v274 = vmul.f32 %v269, 0.015625
        %v275 = vmul.f32 %v273, 0.015625
        %v276 = vmul.f32 %v274, %v274
        %v277 = vsub.f32 %v275, %v276
        %v278 = vadd.f32 %v277, 1e-05
        %v279 = vrsqrt.pop %v278
        %v280 = vld [vmem:[%s2] sm:$0xff]
        %v281 = vmul.f32 %v280, %v279
        %v282 = vmul.f32 %v274, %v281
        %284 = vrot.lane.b32.xlu0 %v282, 1
        %v285 = vpop.permute.xlu0 %284
        %v287 = vsub.f32 %v280, %v285
        %289 = vset.pattern.permute.xlu0 0
        %290 = vperm.xlu0 %289, %v281
        %v291 = vpop.permute.xlu0 %290
        %v293 = vmul.f32 %v262, %v291
        %295 = vset.pattern.permute.xlu0 1
        %296 = vperm.xlu0 %295, %v287
        %v297 = vpop.permute.xlu0 %296
        %v299 = vadd.f32 %v293, %v297
        %v300 = vmax.f32 %v299, 0.0
        %301 = vst.msk [vmem:[%s188] sm:$0xff] %vm223, %v300
        %s302 = sand.u32 %s96, 1
        %s303 = scalar_lea.sflag [#allocation4], %s302
        %s304 = sand.u32 %s96, 1
        %s305 = smul.addr %s304, 8
        %s306 = scalar_lea.vmem [#allocation5], %s305
        // Predicated region
        $region37: #{tpu_custom_call.1} parent=31 // pred_check
          %p307 = pneg %p106
        $region38: #{tpu_custom_call.1} parent=31 // pred_check_branch
          %309 = sbr.rel (%p307) target = $region40
        $region39: #{tpu_custom_call.1} parent=31 // pred_region
          %s311 = ssub.s32 128, 128
          %312 = vsyncadd %s303, %s311
          %s313 = smul.addr %s20, 128
          %s314 = scalar_lea.hbm %s3, %s313
          %s316 = sshll.u32 %s306, 4
          %s317 = int_to_ptr.vmem [resolvable:$true] %s316
          %319 = dma.vmem_to_hbm [thread:$0]  %s317, 128, %s314, %s303
        $region40: #{tpu_custom_call.1} parent=31 // pred_fallthru
          _
      $region32: #{tpu_custom_call.1} parent=5 // pred_fallthru
        _
      %p320 = scmp.le.s32.totalorder 2, %s15
      // Predicated region
      $region41: #{tpu_custom_call.1} parent=5 // pred_check
        %p321 = pneg %p320
      $region42: #{tpu_custom_call.1} parent=5 // pred_check_branch
        %323 = sbr.rel (%p321) target = $region44
      $region43: #{tpu_custom_call.1} parent=5 // pred_region
        %s324 = ssub.s32 %s15, 2
        // Predicated region
        $region45: #{tpu_custom_call.1} parent=43 // pred_check
          %p325 = pneg %p112
        $region46: #{tpu_custom_call.1} parent=43 // pred_check_branch
          %327 = sbr.rel (%p325) target = $region48
        $region47: #{tpu_custom_call.1} parent=43 // pred_region
          %s328 = sand.u32 %s97, 1
          %s329 = scalar_lea.sflag [#allocation4], %s328
          %s330 = sand.u32 %s97, 1
          %s331 = smul.addr %s330, 8
          %s332 = scalar_lea.vmem [#allocation5], %s331
          %333 = dma.done %s329, 128
        $region48: #{tpu_custom_call.1} parent=43 // pred_fallthru
          _
      $region44: #{tpu_custom_call.1} parent=5 // pred_fallthru
        _
    $region6: #{tpu_custom_call.1} parent=1 // loop_footer
      %s19 = sadd.s32 1, %s15
    $region7: #{tpu_custom_call.1} parent=1 // loop_footer_branch
      %14 = sbr.rel target = $region3
    $region8: #{tpu_custom_call.1} parent=1 // loop_exit
      _
    %334 = vsyncpa [#allocation3], 1
    %s335 = scalar_lea.sflag [#allocation3], 1
    %336 = vsyncpa %s335, 1
    %337 = vsyncpa [#allocation4], 1
    %s338 = scalar_lea.sflag [#allocation4], 1
    %339 = vsyncpa %s338, 1

</llo_original>
